<compile_context>
chip_gen: v5e
topology: v5e:2x2
jax: 0.10.0
libtpu: 0.0.40
codegen_flags: <defaults>
</compile_context>

<pallas_src>
import functools

import jax
import jax.numpy as jnp
import numpy as np
from jax.experimental import pallas as pl
from jax.experimental.pallas import tpu as pltpu


# ---------------------------------------------------------------------------
# Tuning knobs
# ---------------------------------------------------------------------------
# Path A is used only when the (double-buffered) resident table stays small.
_VMEM_TABLE_BUDGET = 8 * 1024 * 1024      # 2 x table bytes must fit under this
_MAX_ONEHOT_ITEMS = 1024                  # keep the one-hot matmul cheap
_ITEM_CHUNK = 256                         # MXU contraction depth per pass
# Outstanding row DMAs in the HBM-gather path (latency x bandwidth coverage).
_DMA_SLOTS = 32
# VMEM budget for the double-buffered (TB, D_pad) output block.
_OUT_BLOCK_VMEM_BUDGET = 4 * 1024 * 1024


def _round_up(x: int, m: int) -> int:
    return ((x + m - 1) // m) * m


def _pick_block_rows(n: int, d_pad: int, itemsize: int, target: int = 256) -> int:
    """Rows gathered per grid step.

    Multiple of 32 (covers f32/bf16/int8 sublane packing), large enough to
    amortize the ~0.35us per-grid-step overhead, small enough that the
    double-buffered (TB, d_pad) output block stays within budget, and capped
    at ~half the work so >=2 grid blocks exist for v7x's two TensorCores."""
    cap = max(32, (_OUT_BLOCK_VMEM_BUDGET // (2 * d_pad * itemsize)) // 32 * 32)
    half = max(32, _round_up(-(-n // 2), 32))
    return int(min(max(target, 32), cap, _round_up(n, 32), half))


# ---------------------------------------------------------------------------
# Path A: small table -> VMEM-resident table, chunked one-hot MXU gather
# ---------------------------------------------------------------------------
def _make_onehot_kernel(num_items, chunk, precision):
    num_chunks = -(-num_items // chunk)

    def kernel(idx_ref, tab_ref, o_ref, acc_ref):
        # idx_ref: VMEM (TB, 1) int32 item ids for this output block
        # tab_ref: VMEM (num_items, D_pad) full table (resident across steps)
        # o_ref:   VMEM (TB, D_pad) gathered rows
        # acc_ref: VMEM (TB, D_pad) f32 accumulator (used when chunking)
        tb = o_ref.shape[0]
        idx = idx_ref[...]                                       # (TB, 1)

        def chunk_dot(base, size):
            item_ids = base + jax.lax.broadcasted_iota(jnp.int32, (tb, size), 1)
            one_hot = (item_ids == idx).astype(tab_ref.dtype)    # (TB, size)
            # One-hot entries are exactly {0, 1}; the matmul is a pure gather.
            return jnp.dot(one_hot, tab_ref[pl.ds(base, size), :],
                           preferred_element_type=jnp.float32,
                           precision=precision)

        if num_chunks == 1:
            o_ref[...] = chunk_dot(0, num_items).astype(o_ref.dtype)
        else:
            # Chunk over num_items: live one-hot tile stays <= (TB, chunk),
            # partial results accumulate into the f32 VMEM scratch.
            acc_ref[...] = jnp.zeros_like(acc_ref)
            for c in range(num_chunks):          # static, small trip-count
                base = c * chunk
                acc_ref[...] += chunk_dot(base, min(chunk, num_items - base))
            o_ref[...] = acc_ref[...].astype(o_ref.dtype)

    return kernel


def _gather_vmem_table(table, flat_idx):
    num_items, d_pad = table.shape            # table is already lane-padded
    dt = table.dtype
    itemsize = jnp.dtype(dt).itemsize
    n = flat_idx.shape[0]
    tb = _pick_block_rows(n, d_pad, itemsize)
    n_pad = _round_up(n, tb)
    num_blocks = n_pad // tb
    idx2d = jnp.pad(flat_idx, (0, n_pad - n)).reshape(n_pad, 1)

    # HIGHEST only where needed: f32 tables (exact multi-pass gather); bf16
    # tables are already exact at DEFAULT with a {0,1} one-hot.
    if dt == jnp.float32:
        precision, passes = jax.lax.Precision.HIGHEST, 6
    else:
        precision, passes = jax.lax.Precision.DEFAULT, 1

    kernel = _make_onehot_kernel(num_items, _ITEM_CHUNK, precision)

    out = pl.pallas_call(
        kernel,
        out_shape=jax.ShapeDtypeStruct((n_pad, d_pad), dt),
        grid=(num_blocks,),
        in_specs=[
            pl.BlockSpec((tb, 1), lambda i: (i, 0)),            # per-block indices
            pl.BlockSpec((num_items, d_pad), lambda i: (0, 0)),  # table, VMEM-resident
        ],
        out_specs=pl.BlockSpec((tb, d_pad), lambda i: (i, 0)),
        scratch_shapes=[pltpu.VMEM((tb, d_pad), jnp.float32)],
        compiler_params=pltpu.CompilerParams(
            dimension_semantics=("parallel",),                   # independent blocks
        ),
        cost_estimate=pl.CostEstimate(
            flops=int(2 * passes * n_pad * num_items * d_pad),
            transcendentals=0,
            bytes_accessed=int((num_items * d_pad + 2 * n_pad * d_pad) * itemsize
                               + 4 * n_pad),
        ),
    )(idx2d, table)
    return out[:n]


# ---------------------------------------------------------------------------
# Path B: large table -> table stays in HBM, batched manual DMA row gather
# ---------------------------------------------------------------------------
def _dma_gather_kernel(idx_ref, tab_hbm, o_ref, sems):
    # idx_ref: SMEM (1, TB) int32 item ids for this output block
    # tab_hbm: HBM ref (num_items, D_pad); memory_space=pl.ANY -> no auto DMA
    # o_ref:   VMEM (TB, D_pad) output block; rows are DMA'd straight into it
    # sems:    (_DMA_SLOTS,) DMA semaphores -> many copies in flight
    tb = o_ref.shape[0]
    n_slots = min(_DMA_SLOTS, tb)

    def issue(row, r):
        pltpu.make_async_copy(
            tab_hbm.at[pl.ds(row, 1), :],
            o_ref.at[pl.ds(r, 1), :],
            sems.at[r % n_slots],
        ).start()

    def finish(r):
        # Same-shaped descriptor on the same semaphore is a valid wait.
        pltpu.make_async_copy(
            tab_hbm.at[pl.ds(0, 1), :],
            o_ref.at[pl.ds(r, 1), :],
            sems.at[r % n_slots],
        ).wait()

    # Prime the DMA pipeline (static, unrolled).
    for r in range(n_slots):
        issue(idx_ref[0, r], r)

    # Steady state: retire the copy issued n_slots rows ago, launch a new one.
    @pl.loop(n_slots, tb)
    def _(r):
        row = idx_ref[0, r]          # read BEFORE wait: .wait() breaks sst->sld fwd
        finish(r - n_slots)
        issue(row, r)

    # Drain the last in-flight copies.
    @pl.loop(tb - n_slots, tb)
    def _(r):
        finish(r)


def _gather_hbm_table(table, flat_idx):
    num_items, d_pad = table.shape
    dt = table.dtype
    itemsize = jnp.dtype(dt).itemsize
    n = flat_idx.shape[0]
    tb = _pick_block_rows(n, d_pad, itemsize)
    n_pad = _round_up(n, tb)
    num_blocks = n_pad // tb
    # Per-block (1, TB) index slices -> SMEM stays tiny regardless of batch.
    idx2d = jnp.pad(flat_idx, (0, n_pad - n)).reshape(num_blocks, tb)

    out = pl.pallas_call(
        _dma_gather_kernel,
        out_shape=jax.ShapeDtypeStruct((n_pad, d_pad), dt),
        grid=(num_blocks,),
        in_specs=[
            pl.BlockSpec((1, tb), lambda i: (i, 0),
                         memory_space=pltpu.MemorySpace.SMEM),
            pl.BlockSpec(memory_space=pl.ANY),                   # table stays in HBM
        ],
        out_specs=pl.BlockSpec((tb, d_pad), lambda i: (i, 0)),
        scratch_shapes=[pltpu.SemaphoreType.DMA((_DMA_SLOTS,))],
        compiler_params=pltpu.CompilerParams(
            dimension_semantics=("parallel",),
        ),
        cost_estimate=pl.CostEstimate(
            flops=0,
            transcendentals=0,
            bytes_accessed=int(2 * n_pad * d_pad * itemsize + 4 * n_pad),
        ),
    )(idx2d, table)
    return out[:n]


# ---------------------------------------------------------------------------
# Public API (ItemEmbedding.forward equivalent)
# ---------------------------------------------------------------------------
@functools.partial(jax.jit, static_argnames=("force_hbm_gather",))
def item_embedding_lookup(table, indices, force_hbm_gather=False):
    """Pallas equivalent of `table[indices]` (embedding lookup)."""
    num_items, d = table.shape
    assert num_items >= 1
    orig_shape = indices.shape
    flat_idx = indices.reshape(-1).astype(jnp.int32)
    # Clamp instead of faulting on out-of-range ids (see TODO at top of file).
    flat_idx = jnp.clip(flat_idx, 0, num_items - 1)
    n = flat_idx.shape[0]
    if n == 0:
        return jnp.zeros((*orig_shape, d), table.dtype)

    # Pad D to a multiple of 128 so output stores are lane-dense (unmasked vst).
    d_pad = _round_up(d, 128)
    table_p = table if d_pad == d else jnp.pad(table, ((0, 0), (0, d_pad - d)))
    itemsize = jnp.dtype(table.dtype).itemsize

    use_vmem_table = (
        not force_hbm_gather
        and num_items <= _MAX_ONEHOT_ITEMS
        # 2x: Pallas double-buffers the table input even though it is reused.
        and 2 * num_items * d_pad * itemsize <= _VMEM_TABLE_BUDGET
    )
    if use_vmem_table:
        out = _gather_vmem_table(table_p, flat_idx)
    else:
        out = _gather_hbm_table(table_p, flat_idx)

    if d_pad != d:
        out = out[:, :d]
    return out.reshape(*orig_shape, d)


def kaiming_uniform_init(key, num_items, num_latent_factors, dtype=jnp.float32):
    """Equivalent of nn.init.kaiming_uniform_ defaults: a=0, mode='fan_in',
    nonlinearity='leaky_relu' -> bound = sqrt(6 / fan_in), fan_in = num_latent_factors."""
    fan_in = num_latent_factors
    bound = float(np.sqrt(6.0 / fan_in))
    return jax.random.uniform(
        key, (num_items, num_latent_factors), dtype=dtype,
        minval=-bound, maxval=bound)


if __name__ == "__main__":
    key = jax.random.PRNGKey(0)
    k1, k2, k3, k4 = jax.random.split(key, 4)

    # ---- Config 1: module-sized example (64 items x 128 latent factors). ----
    num_items, num_latent_factors = 64, 128
    item_embedding = kaiming_uniform_init(k1, num_items, num_latent_factors)
    x = jax.random.randint(k2, (2, 8), minval=0, maxval=num_items, dtype=jnp.int32)
    ref = item_embedding[x]

    # Path A (auto-selected: table fits in VMEM -> one-hot MXU gather).
    out = jax.block_until_ready(item_embedding_lookup(item_embedding, x))
    assert out.shape == (2, 8, num_latent_factors)
    assert out.dtype == item_embedding.dtype
    np.testing.assert_allclose(np.asarray(out), np.asarray(ref), rtol=1e-6, atol=1e-6)

    # Path B (HBM table + batched manual DMA gather) validated on the same data.
    out_dma = jax.block_until_ready(
        item_embedding_lookup(item_embedding, x, force_hbm_gather=True))
    np.testing.assert_allclose(np.asarray(out_dma), np.asarray(ref), rtol=0, atol=0)

    # ---- Config 2: exercises the chunked one-hot (>256 items), multi-block
    # grid, and D padding (96 -> 128) paths. ----
    num_items2, d2 = 320, 96
    table2 = kaiming_uniform_init(k3, num_items2, d2)
    x2 = jax.random.randint(k4, (5, 8), minval=0, maxval=num_items2, dtype=jnp.int32)
    ref2 = table2[x2]
    out2 = jax.block_until_ready(item_embedding_lookup(table2, x2))
    assert out2.shape == (5, 8, d2)
    np.testing.assert_allclose(np.asarray(out2), np.asarray(ref2), rtol=1e-6, atol=1e-6)

    print("KERNEL_OK")
</pallas_src>

<mosaic_0001>
module attributes {stable_mosaic.version = 11 : i64} {
  func.func @kernel(%arg0: i32, %arg1: memref<32x1xi32, #tpu.memory_space<vmem>>, %arg2: memref<64x128xf32, #tpu.memory_space<vmem>>, %arg3: memref<32x128xf32, #tpu.memory_space<vmem>>, %arg4: memref<32x128xf32, #tpu.memory_space<vmem>>) attributes {dimension_semantics = [#tpu.dimension_semantics<parallel>], iteration_bounds = array<i64: 1>, scalar_prefetch = 0 : i64, scratch_operands = 1 : i64, tpu.core_type = #tpu.core_type<tc>, window_params = [{transform_indices = @transform_0, window_bounds = array<i64: 32, 1>}, {pipeline_mode = #tpu.pipeline_mode<synchronous>, transform_indices = @transform_1, window_bounds = array<i64: 64, 128>}, {transform_indices = @transform_2, window_bounds = array<i64: 32, 128>}]} {
    %c0 = arith.constant 0 : index
    %c0_0 = arith.constant 0 : index
    %0 = vector.load %arg1[%c0, %c0_0] : memref<32x1xi32, #tpu.memory_space<vmem>>, vector<32x1xi32>
    %1 = tpu.iota {dimensions = array<i32: 1>} : vector<32x64xi32>
    %c0_i32 = arith.constant 0 : i32
    %2 = vector.broadcast %c0_i32 : i32 to vector<32x64xi32>
    %3 = arith.addi %2, %1 : vector<32x64xi32>
    %4 = vector.broadcast %0 : vector<32x1xi32> to vector<32x64xi32>
    %5 = arith.cmpi eq, %3, %4 : vector<32x64xi32>
    %6 = arith.extui %5 : vector<32x64xi1> to vector<32x64xi32>
    %7 = arith.sitofp %6 : vector<32x64xi32> to vector<32x64xf32>
    %c0_1 = arith.constant 0 : index
    %c0_2 = arith.constant 0 : index
    %8 = vector.load %arg2[%c0_1, %c0_2] : memref<64x128xf32, #tpu.memory_space<vmem>>, vector<64x128xf32>
    %cst = arith.constant dense<0.000000e+00> : vector<32x128xf32>
    %9 = tpu.matmul %7, %8, %cst {dimension_numbers = #tpu.dot_dimension_numbers<[1], [0], [0], [1], [0, 0, 1, 1], [], []>, precision = #tpu.contract_precision<fp32>} : vector<32x64xf32>, vector<64x128xf32>, vector<32x128xf32> -> vector<32x128xf32>
    %c0_3 = arith.constant 0 : index
    %c0_4 = arith.constant 0 : index
    %10 = vector.load %arg3[%c0_3, %c0_4] : memref<32x128xf32, #tpu.memory_space<vmem>>, vector<32x128xf32>
    tpu.vector_store %arg3[%c0_3, %c0_4], %9 {strides = array<i32>} : memref<32x128xf32, #tpu.memory_space<vmem>>, vector<32x128xf32>,
    return
  }
  func.func @transform_0(%arg0: i32) -> (i32, i32) {
    %c0_i32 = arith.constant 0 : i32
    %c0_i32_0 = arith.constant 0 : i32
    return %arg0, %c0_i32 : i32, i32
  }
  func.func @transform_1(%arg0: i32) -> (i32, i32) {
    %c0_i32 = arith.constant 0 : i32
    %c0_i32_0 = arith.constant 0 : i32
    %c0_i32_1 = arith.constant 0 : i32
    return %c0_i32, %c0_i32_0 : i32, i32
  }
  func.func @transform_2(%arg0: i32) -> (i32, i32) {
    %c0_i32 = arith.constant 0 : i32
    %c0_i32_0 = arith.constant 0 : i32
    return %arg0, %c0_i32 : i32, i32
  }
}

</mosaic_0001>

<llo_original>
// kernel: item_embedding_lookup.1
$region0: #{item_embedding_lookup.1}
  #allocation0 [shape = 'u32[]', space=smem, size = 0x4, offset = 0x4, fixed_abs, tag = 'smem constant byte address 0x4 - core index']
  #allocation1 [shape = 'u32[72,128]{1,0:T(1,128)}', space=vmem, size = 0x9000, scoped, tag = 'internal scratch']
  #allocation2 [shape = 'f32[32,128]{1,0:T(8,128)}', space=vmem, size = 0x4000, scoped, tag = 'scratch operand']
  %s0 = inlined_call_operand.vmem [shape: s32[32,1], index: 0, kind: input, shape index: {}]
  %s1 = inlined_call_operand.hbm [shape: f32[64,128], index: 1, kind: input, shape index: {}]
  %s2 = inlined_call_operand.vmem [shape: f32[32,128], index: 2, kind: output, shape index: {}]
  %s3 = sld [smem:[#allocation0]]
  $region22: #{item_embedding_lookup.1} parent=0
    _
  %s5 = ssub.s32 1, %s3
  %s6 = scalar_select 0, %s5, %s3
  $region1: #{item_embedding_lookup.1} parent=0
    #allocation3 [shape = 'u8[32768]{0}', space=vmem, size = 0x8000, scoped, tag = 'input window, operand 1, single buffered']
    #allocation4 [shape = 's32[1]{0}', space=sflag, size = 0x4, scoped, tag = 'scoped memory for item_embedding_lookup.1']
    %7 = vsyncpa [#allocation4], 0
    // Predicated region
    $region2: #{item_embedding_lookup.1} parent=1 // pred_check
      _
    $region3: #{item_embedding_lookup.1} parent=1 // pred_check_branch
      %9 = sbr.rel (0) target = $region5
    $region4: #{item_embedding_lookup.1} parent=1 // pred_region
      _
    $region5: #{item_embedding_lookup.1} parent=1 // pred_fallthru
      _
    // Predicated region
    $region6: #{item_embedding_lookup.1} parent=1 // pred_check
      _
    $region7: #{item_embedding_lookup.1} parent=1 // pred_check_branch
      %11 = sbr.rel (0) target = $region9
    $region8: #{item_embedding_lookup.1} parent=1 // pred_region
      %13 = vsyncadd [#allocation4], 0
      %s14 = sshll.u32 %s1, 4
      %s15 = int_to_ptr.hbm [resolvable:$true] %s14
      %s16 = sshll.u32 [#allocation3], 4
      %s17 = int_to_ptr.vmem [resolvable:$true] %s16
      %22 = dma.hbm_to_vmem [thread:$0]  %s15, 1024, %s17, [#allocation4], 128, 128, 8
    $region9: #{item_embedding_lookup.1} parent=1 // pred_fallthru
      _
    // Predicated region
    $region10: #{item_embedding_lookup.1} parent=1 // pred_check
      _
    $region11: #{item_embedding_lookup.1} parent=1 // pred_check_branch
      %24 = sbr.rel (0) target = $region13
    $region12: #{item_embedding_lookup.1} parent=1 // pred_region
      %26 = dma.done [#allocation4], 1024
    $region13: #{item_embedding_lookup.1} parent=1 // pred_fallthru
      _
    %v27 = vld [vmem:[%s0] sm:$0xff]
    %v28 = vld [vmem:[%s0 + $0x8] sm:$0xff]
    %v29 = vld [vmem:[%s0 + $0x10] sm:$0xff]
    %v30 = vld [vmem:[%s0 + $0x18] sm:$0xff]
    %v31 = vlaneseq
    %v32 = vand.u32 %v31, 127
    %33 = vset.pattern.permute.xlu0 0
    %34 = vperm.xlu0 %33, %v27
    %v35 = vpop.permute.xlu0 %34
    %36 = vset.pattern.permute.xlu0 0
    %37 = vperm.xlu0 %36, %v28
    %v38 = vpop.permute.xlu0 %37
    %39 = vset.pattern.permute.xlu0 0
    %40 = vperm.xlu0 %39, %v29
    %v41 = vpop.permute.xlu0 %40
    %42 = vset.pattern.permute.xlu0 0
    %43 = vperm.xlu0 %42, %v30
    %v44 = vpop.permute.xlu0 %43
    %vm45 = vcmp.eq.s32.totalorder %v32, %v35
    %vm46 = vcmp.eq.s32.totalorder %v32, %v38
    %vm47 = vcmp.eq.s32.totalorder %v32, %v41
    %vm48 = vcmp.eq.s32.totalorder %v32, %v44
    %v49 = vsel %vm45, 1, 0
    %v50 = vsel %vm46, 1, 0
    %v51 = vsel %vm47, 1, 0
    %v52 = vsel %vm48, 1, 0
    %v53 = vcvt.s32.f32 %v49
    %v54 = vcvt.s32.f32 %v50
    %v55 = vcvt.s32.f32 %v51
    %v56 = vcvt.s32.f32 %v52
    %v57 = vld [vmem:[#allocation3] sm:$0xff]
    %v58 = vld [vmem:[#allocation3 + $0x8] sm:$0xff]
    %v59 = vld [vmem:[#allocation3 + $0x10] sm:$0xff]
    %v60 = vld [vmem:[#allocation3 + $0x18] sm:$0xff]
    %v61 = vld [vmem:[#allocation3 + $0x20] sm:$0xff]
    %v62 = vld [vmem:[#allocation3 + $0x28] sm:$0xff]
    %v63 = vld [vmem:[#allocation3 + $0x30] sm:$0xff]
    %v64 = vld [vmem:[#allocation3 + $0x38] sm:$0xff]
    %vm65 = vcmask 523264
    %v67 = vsel %vm65, %v53, 0
    %v70 = vsel %vm65, %v54, 0
    %v73 = vsel %vm65, %v55, 0
    %v76 = vsel %vm65, %v56, 0
    %78 = vmatpush.msra.mxu0 0.0
    %79 = vmatpush.msra.mxu0 0.0
    %80 = vmatpush.msra.mxu0 0.0
    %81 = vmatpush.msra.mxu0 0.0
    %82 = vmatpush.msra.mxu0 0.0
    %83 = vmatpush.msra.mxu0 0.0
    %84 = vmatpush.msra.mxu0 0.0
    %85 = vmatpush.msra.mxu0 0.0
    %v86 = vand.u32 %v64, 4294901760
    %87 = vmatpush.msra.mxu0 %v86
    %v88 = vand.u32 %v63, 4294901760
    %89 = vmatpush.msra.mxu0 %v88
    %v90 = vand.u32 %v62, 4294901760
    %91 = vmatpush.msra.mxu0 %v90
    %v92 = vand.u32 %v61, 4294901760
    %93 = vmatpush.msra.mxu0 %v92
    %v94 = vand.u32 %v60, 4294901760
    %95 = vmatpush.msra.mxu0 %v94
    %v96 = vand.u32 %v59, 4294901760
    %97 = vmatpush.msra.mxu0 %v96
    %v98 = vand.u32 %v58, 4294901760
    %99 = vmatpush.msra.mxu0 %v98
    %v100 = vand.u32 %v57, 4294901760
    %101 = vmatpush.msra.mxu0 %v100
    %v102 = vand.u32 %v67, 4294901760
    %v103 = vsub.f32 %v67, %v102
    %v104 = vand.u32 %v103, 4294901760
    %v105 = vsub.f32 %v103, %v104
    %v106 = vand.u32 %v105, 4294901760
    %107 = vmatmul.f32.gmra.mxu0 %v106
    %v108 = vpop.f32.mrf.mxu0
    %v109 = vadd.f32 0.0, %v108
    %v110 = vand.u32 %v70, 4294901760
    %v111 = vsub.f32 %v70, %v110
    %v112 = vand.u32 %v111, 4294901760
    %v113 = vsub.f32 %v111, %v112
    %v114 = vand.u32 %v113, 4294901760
    %115 = vmatmul.f32.gmra.mxu0 %v114
    %v116 = vpop.f32.mrf.mxu0
    %v117 = vadd.f32 0.0, %v116
    %v118 = vand.u32 %v73, 4294901760
    %v119 = vsub.f32 %v73, %v118
    %v120 = vand.u32 %v119, 4294901760
    %v121 = vsub.f32 %v119, %v120
    %v122 = vand.u32 %v121, 4294901760
    %123 = vmatmul.f32.gmra.mxu0 %v122
    %v124 = vpop.f32.mrf.mxu0
    %v125 = vadd.f32 0.0, %v124
    %v126 = vand.u32 %v76, 4294901760
    %v127 = vsub.f32 %v76, %v126
    %v128 = vand.u32 %v127, 4294901760
    %v129 = vsub.f32 %v127, %v128
    %v130 = vand.u32 %v129, 4294901760
    %131 = vmatmul.f32.gmra.mxu0 %v130
    %v132 = vpop.f32.mrf.mxu0
    %v133 = vadd.f32 0.0, %v132
    %134 = vdwg.mxu0
    %135 = vmatpush.msra.mxu0 0.0
    %136 = vmatpush.msra.mxu0 0.0
    %137 = vmatpush.msra.mxu0 0.0
    %138 = vmatpush.msra.mxu0 0.0
    %139 = vmatpush.msra.mxu0 0.0
    %140 = vmatpush.msra.mxu0 0.0
    %141 = vmatpush.msra.mxu0 0.0
    %142 = vmatpush.msra.mxu0 0.0
    %v143 = vand.u32 %v64, 4294901760
    %v144 = vsub.f32 %v64, %v143
    %v145 = vand.u32 %v144, 4294901760
    %v146 = vsub.f32 %v144, %v145
    %v147 = vand.u32 %v146, 4294901760
    %148 = vmatpush.msra.mxu0 %v147
    %v149 = vand.u32 %v63, 4294901760
    %v150 = vsub.f32 %v63, %v149
    %v151 = vand.u32 %v150, 4294901760
    %v152 = vsub.f32 %v150, %v151
    %v153 = vand.u32 %v152, 4294901760
    %154 = vmatpush.msra.mxu0 %v153
    %v155 = vand.u32 %v62, 4294901760
    %v156 = vsub.f32 %v62, %v155
    %v157 = vand.u32 %v156, 4294901760
    %v158 = vsub.f32 %v156, %v157
    %v159 = vand.u32 %v158, 4294901760
    %160 = vmatpush.msra.mxu0 %v159
    %v161 = vand.u32 %v61, 4294901760
    %v162 = vsub.f32 %v61, %v161
    %v163 = vand.u32 %v162, 4294901760
    %v164 = vsub.f32 %v162, %v163
    %v165 = vand.u32 %v164, 4294901760
    %166 = vmatpush.msra.mxu0 %v165
    %v167 = vand.u32 %v60, 4294901760
    %v168 = vsub.f32 %v60, %v167
    %v169 = vand.u32 %v168, 4294901760
    %v170 = vsub.f32 %v168, %v169
    %v171 = vand.u32 %v170, 4294901760
    %172 = vmatpush.msra.mxu0 %v171
    %v173 = vand.u32 %v59, 4294901760
    %v174 = vsub.f32 %v59, %v173
    %v175 = vand.u32 %v174, 4294901760
    %v176 = vsub.f32 %v174, %v175
    %v177 = vand.u32 %v176, 4294901760
    %178 = vmatpush.msra.mxu0 %v177
    %v179 = vand.u32 %v58, 4294901760
    %v180 = vsub.f32 %v58, %v179
    %v181 = vand.u32 %v180, 4294901760
    %v182 = vsub.f32 %v180, %v181
    %v183 = vand.u32 %v182, 4294901760
    %184 = vmatpush.msra.mxu0 %v183
    %v185 = vand.u32 %v57, 4294901760
    %v186 = vsub.f32 %v57, %v185
    %v187 = vand.u32 %v186, 4294901760
    %v188 = vsub.f32 %v186, %v187
    %v189 = vand.u32 %v188, 4294901760
    %190 = vmatpush.msra.mxu0 %v189
    %v191 = vand.u32 %v67, 4294901760
    %192 = vmatmul.f32.gmra.mxu0 %v191
    %v193 = vpop.f32.mrf.mxu0
    %v194 = vadd.f32 %v109, %v193
    %v195 = vand.u32 %v70, 4294901760
    %196 = vmatmul.f32.gmra.mxu0 %v195
    %v197 = vpop.f32.mrf.mxu0
    %v198 = vadd.f32 %v117, %v197
    %v199 = vand.u32 %v73, 4294901760
    %200 = vmatmul.f32.gmra.mxu0 %v199
    %v201 = vpop.f32.mrf.mxu0
    %v202 = vadd.f32 %v125, %v201
    %v203 = vand.u32 %v76, 4294901760
    %204 = vmatmul.f32.gmra.mxu0 %v203
    %v205 = vpop.f32.mrf.mxu0
    %v206 = vadd.f32 %v133, %v205
    %207 = vdwg.mxu0
    %208 = vmatpush.msra.mxu0 0.0
    %209 = vmatpush.msra.mxu0 0.0
    %210 = vmatpush.msra.mxu0 0.0
    %211 = vmatpush.msra.mxu0 0.0
    %212 = vmatpush.msra.mxu0 0.0
    %213 = vmatpush.msra.mxu0 0.0
    %214 = vmatpush.msra.mxu0 0.0
    %215 = vmatpush.msra.mxu0 0.0
    %v216 = vand.u32 %v64, 4294901760
    %v217 = vsub.f32 %v64, %v216
    %218 = vmatpush.msra.mxu0 %v217
    %v219 = vand.u32 %v63, 4294901760
    %v220 = vsub.f32 %v63, %v219
    %221 = vmatpush.msra.mxu0 %v220
    %v222 = vand.u32 %v62, 4294901760
    %v223 = vsub.f32 %v62, %v222
    %224 = vmatpush.msra.mxu0 %v223
    %v225 = vand.u32 %v61, 4294901760
    %v226 = vsub.f32 %v61, %v225
    %227 = vmatpush.msra.mxu0 %v226
    %v228 = vand.u32 %v60, 4294901760
    %v229 = vsub.f32 %v60, %v228
    %230 = vmatpush.msra.mxu0 %v229
    %v231 = vand.u32 %v59, 4294901760
    %v232 = vsub.f32 %v59, %v231
    %233 = vmatpush.msra.mxu0 %v232
    %v234 = vand.u32 %v58, 4294901760
    %v235 = vsub.f32 %v58, %v234
    %236 = vmatpush.msra.mxu0 %v235
    %v237 = vand.u32 %v57, 4294901760
    %v238 = vsub.f32 %v57, %v237
    %239 = vmatpush.msra.mxu0 %v238
    %v240 = vand.u32 %v67, 4294901760
    %v241 = vsub.f32 %v67, %v240
    %242 = vmatmul.f32.gmra.mxu0 %v241
    %v243 = vpop.f32.mrf.mxu0
    %v244 = vadd.f32 %v194, %v243
    %v245 = vand.u32 %v70, 4294901760
    %v246 = vsub.f32 %v70, %v245
    %247 = vmatmul.f32.gmra.mxu0 %v246
    %v248 = vpop.f32.mrf.mxu0
    %v249 = vadd.f32 %v198, %v248
    %v250 = vand.u32 %v73, 4294901760
    %v251 = vsub.f32 %v73, %v250
    %252 = vmatmul.f32.gmra.mxu0 %v251
    %v253 = vpop.f32.mrf.mxu0
    %v254 = vadd.f32 %v202, %v253
    %v255 = vand.u32 %v76, 4294901760
    %v256 = vsub.f32 %v76, %v255
    %257 = vmatmul.f32.gmra.mxu0 %v256
    %v258 = vpop.f32.mrf.mxu0
    %v259 = vadd.f32 %v206, %v258
    %260 = vdwg.mxu0
    %261 = vmatpush.msra.mxu0 0.0
    %262 = vmatpush.msra.mxu0 0.0
    %263 = vmatpush.msra.mxu0 0.0
    %264 = vmatpush.msra.mxu0 0.0
    %265 = vmatpush.msra.mxu0 0.0
    %266 = vmatpush.msra.mxu0 0.0
    %267 = vmatpush.msra.mxu0 0.0
    %268 = vmatpush.msra.mxu0 0.0
    %v269 = vand.u32 %v64, 4294901760
    %270 = vmatpush.msra.mxu0 %v269
    %v271 = vand.u32 %v63, 4294901760
    %272 = vmatpush.msra.mxu0 %v271
    %v273 = vand.u32 %v62, 4294901760
    %274 = vmatpush.msra.mxu0 %v273
    %v275 = vand.u32 %v61, 4294901760
    %276 = vmatpush.msra.mxu0 %v275
    %v277 = vand.u32 %v60, 4294901760
    %278 = vmatpush.msra.mxu0 %v277
    %v279 = vand.u32 %v59, 4294901760
    %280 = vmatpush.msra.mxu0 %v279
    %v281 = vand.u32 %v58, 4294901760
    %282 = vmatpush.msra.mxu0 %v281
    %v283 = vand.u32 %v57, 4294901760
    %284 = vmatpush.msra.mxu0 %v283
    %v285 = vand.u32 %v67, 4294901760
    %v286 = vsub.f32 %v67, %v285
    %v287 = vand.u32 %v286, 4294901760
    %288 = vmatmul.f32.gmra.mxu0 %v287
    %v289 = vpop.f32.mrf.mxu0
    %v290 = vadd.f32 %v244, %v289
    %v291 = vand.u32 %v70, 4294901760
    %v292 = vsub.f32 %v70, %v291
    %v293 = vand.u32 %v292, 4294901760
    %294 = vmatmul.f32.gmra.mxu0 %v293
    %v295 = vpop.f32.mrf.mxu0
    %v296 = vadd.f32 %v249, %v295
    %v297 = vand.u32 %v73, 4294901760
    %v298 = vsub.f32 %v73, %v297
    %v299 = vand.u32 %v298, 4294901760
    %300 = vmatmul.f32.gmra.mxu0 %v299
    %v301 = vpop.f32.mrf.mxu0
    %v302 = vadd.f32 %v254, %v301
    %v303 = vand.u32 %v76, 4294901760
    %v304 = vsub.f32 %v76, %v303
    %v305 = vand.u32 %v304, 4294901760
    %306 = vmatmul.f32.gmra.mxu0 %v305
    %v307 = vpop.f32.mrf.mxu0
    %v308 = vadd.f32 %v259, %v307
    %309 = vdwg.mxu0
    %310 = vmatpush.msra.mxu0 0.0
    %311 = vmatpush.msra.mxu0 0.0
    %312 = vmatpush.msra.mxu0 0.0
    %313 = vmatpush.msra.mxu0 0.0
    %314 = vmatpush.msra.mxu0 0.0
    %315 = vmatpush.msra.mxu0 0.0
    %316 = vmatpush.msra.mxu0 0.0
    %317 = vmatpush.msra.mxu0 0.0
    %v318 = vand.u32 %v64, 4294901760
    %v319 = vsub.f32 %v64, %v318
    %v320 = vand.u32 %v319, 4294901760
    %321 = vmatpush.msra.mxu0 %v320
    %v322 = vand.u32 %v63, 4294901760
    %v323 = vsub.f32 %v63, %v322
    %v324 = vand.u32 %v323, 4294901760
    %325 = vmatpush.msra.mxu0 %v324
    %v326 = vand.u32 %v62, 4294901760
    %v327 = vsub.f32 %v62, %v326
    %v328 = vand.u32 %v327, 4294901760
    %329 = vmatpush.msra.mxu0 %v328
    %v330 = vand.u32 %v61, 4294901760
    %v331 = vsub.f32 %v61, %v330
    %v332 = vand.u32 %v331, 4294901760
    %333 = vmatpush.msra.mxu0 %v332
    %v334 = vand.u32 %v60, 4294901760
    %v335 = vsub.f32 %v60, %v334
    %v336 = vand.u32 %v335, 4294901760
    %337 = vmatpush.msra.mxu0 %v336
    %v338 = vand.u32 %v59, 4294901760
    %v339 = vsub.f32 %v59, %v338
    %v340 = vand.u32 %v339, 4294901760
    %341 = vmatpush.msra.mxu0 %v340
    %v342 = vand.u32 %v58, 4294901760
    %v343 = vsub.f32 %v58, %v342
    %v344 = vand.u32 %v343, 4294901760
    %345 = vmatpush.msra.mxu0 %v344
    %v346 = vand.u32 %v57, 4294901760
    %v347 = vsub.f32 %v57, %v346
    %v348 = vand.u32 %v347, 4294901760
    %349 = vmatpush.msra.mxu0 %v348
    %v350 = vand.u32 %v67, 4294901760
    %351 = vmatmul.f32.gmra.mxu0 %v350
    %v352 = vpop.f32.mrf.mxu0
    %v353 = vadd.f32 %v290, %v352
    %v354 = vand.u32 %v70, 4294901760
    %355 = vmatmul.f32.gmra.mxu0 %v354
    %v356 = vpop.f32.mrf.mxu0
    %v357 = vadd.f32 %v296, %v356
    %v358 = vand.u32 %v73, 4294901760
    %359 = vmatmul.f32.gmra.mxu0 %v358
    %v360 = vpop.f32.mrf.mxu0
    %v361 = vadd.f32 %v302, %v360
    %v362 = vand.u32 %v76, 4294901760
    %363 = vmatmul.f32.gmra.mxu0 %v362
    %v364 = vpop.f32.mrf.mxu0
    %v365 = vadd.f32 %v308, %v364
    %366 = vdwg.mxu0
    %367 = vmatpush.msra.mxu0 0.0
    %368 = vmatpush.msra.mxu0 0.0
    %369 = vmatpush.msra.mxu0 0.0
    %370 = vmatpush.msra.mxu0 0.0
    %371 = vmatpush.msra.mxu0 0.0
    %372 = vmatpush.msra.mxu0 0.0
    %373 = vmatpush.msra.mxu0 0.0
    %374 = vmatpush.msra.mxu0 0.0
    %v375 = vand.u32 %v64, 4294901760
    %376 = vmatpush.msra.mxu0 %v375
    %v377 = vand.u32 %v63, 4294901760
    %378 = vmatpush.msra.mxu0 %v377
    %v379 = vand.u32 %v62, 4294901760
    %380 = vmatpush.msra.mxu0 %v379
    %v381 = vand.u32 %v61, 4294901760
    %382 = vmatpush.msra.mxu0 %v381
    %v383 = vand.u32 %v60, 4294901760
    %384 = vmatpush.msra.mxu0 %v383
    %v385 = vand.u32 %v59, 4294901760
    %386 = vmatpush.msra.mxu0 %v385
    %v387 = vand.u32 %v58, 4294901760
    %388 = vmatpush.msra.mxu0 %v387
    %v389 = vand.u32 %v57, 4294901760
    %390 = vmatpush.msra.mxu0 %v389
    %v391 = vand.u32 %v67, 4294901760
    %392 = vmatmul.f32.gmra.mxu0 %v391
    %v393 = vpop.f32.mrf.mxu0
    %v394 = vadd.f32 %v353, %v393
    %v395 = vand.u32 %v70, 4294901760
    %396 = vmatmul.f32.gmra.mxu0 %v395
    %v397 = vpop.f32.mrf.mxu0
    %v398 = vadd.f32 %v357, %v397
    %v399 = vand.u32 %v73, 4294901760
    %400 = vmatmul.f32.gmra.mxu0 %v399
    %v401 = vpop.f32.mrf.mxu0
    %v402 = vadd.f32 %v361, %v401
    %v403 = vand.u32 %v76, 4294901760
    %404 = vmatmul.f32.gmra.mxu0 %v403
    %v405 = vpop.f32.mrf.mxu0
    %v406 = vadd.f32 %v365, %v405
    %407 = vdwg.mxu0
    %408 = vst [vmem:[%s2] sm:$0xff] %v394
    %409 = vst [vmem:[%s2 + $0x8] sm:$0xff] %v398
    %410 = vst [vmem:[%s2 + $0x10] sm:$0xff] %v402
    %411 = vst [vmem:[%s2 + $0x18] sm:$0xff] %v406
    // Predicated region
    $region14: #{item_embedding_lookup.1} parent=1 // pred_check
      _
    $region15: #{item_embedding_lookup.1} parent=1 // pred_check_branch
      %413 = sbr.rel (0) target = $region17
    $region16: #{item_embedding_lookup.1} parent=1 // pred_region
      _
    $region17: #{item_embedding_lookup.1} parent=1 // pred_fallthru
      _
    // Predicated region
    $region18: #{item_embedding_lookup.1} parent=1 // pred_check
      _
    $region19: #{item_embedding_lookup.1} parent=1 // pred_check_branch
      %415 = sbr.rel (0) target = $region21
    $region20: #{item_embedding_lookup.1} parent=1 // pred_region
      _
    $region21: #{item_embedding_lookup.1} parent=1 // pred_fallthru
      _
    %416 = vsyncpa [#allocation4], 1

</llo_original>
